<compile_context>
chip_gen: v5e
topology: v5e:2x2
jax: 0.10.0
libtpu: 0.0.40
codegen_flags: <defaults>
</compile_context>

<pallas_src>
import functools

import jax
import jax.numpy as jnp
from jax.experimental import pallas as pl
from jax.experimental.pallas import tpu as pltpu


def _round_up(v: int, m: int) -> int:
    return ((v + m - 1) // m) * m


# ----------------------------- kernels --------------------------------------


def _avg_kernel_lane_dense(x_ref, o_ref, *, t: int, c: int):
    """x_ref: (BN, T*C) lane-dense tile; o_ref: (BN, C)."""
    acc = x_ref[:, 0:c].astype(jnp.float32)
    for ti in range(1, t):
        acc = acc + x_ref[:, ti * c:(ti + 1) * c].astype(jnp.float32)
    o_ref[...] = (acc * (1.0 / t)).astype(o_ref.dtype)


def _avg_kernel_3d(x_ref, o_ref, *, t: int):
    """x_ref: (BN, T, C) tile with C % 128 == 0; o_ref: (BN, C)."""
    acc = x_ref[:, 0, :].astype(jnp.float32)
    for ti in range(1, t):
        acc = acc + x_ref[:, ti, :].astype(jnp.float32)
    o_ref[...] = (acc * (1.0 / t)).astype(o_ref.dtype)


# --------------------------- tiling policy -----------------------------------


def _chip_config():
    """Returns (num_tensorcores, base scoped-VMEM limit, input-tile byte target,
    physical VMEM bytes). Conservative fallbacks if the query fails."""
    phys_vmem = 128 << 20
    try:
        phys_vmem = int(pltpu.get_tpu_info().vmem_capacity_bytes)
    except Exception:
        pass
    kind = ""
    try:
        kind = jax.devices()[0].device_kind.lower()
    except Exception:
        pass

    is_v7x = ("7" in kind) or (phys_vmem <= (96 << 20))
    num_tc = 2 if is_v7x else 1

    if is_v7x:
        # 64 MiB physical VMEM per TC: keep 2*in + 2*out comfortably inside.
        base_limit, tile_target = 24 << 20, 8 << 20
    elif "v5" in kind:
        base_limit, tile_target = 24 << 20, 8 << 20
    else:
        # v6e-class (128 MiB physical VMEM, 32 MiB scoped default).
        base_limit, tile_target = 32 << 20, 12 << 20
    return num_tc, base_limit, tile_target, phys_vmem


def _choose_block_rows(n: int, in_row_bytes: int, tile_target: int,
                       num_tc: int) -> int:
    """How many batch rows per grid step."""
    bn = max(1, tile_target // max(1, in_row_bytes))
    if bn >= n:
        bn = n
        # Megacore (v7x only): split a single-block batch across both TCs,
        # keeping the two blocks within 8 rows of each other.
        if num_tc >= 2 and n >= 16:
            half_up = _round_up((n + 1) // 2, 8)
            if half_up < n and (half_up - (n - half_up)) <= 8:
                bn = half_up
            else:
                # Several small steps; the scheduler balances them (including
                # the partial last block) across both cores.
                bn = 8
    else:
        # Output block (bn, C): second-to-last dim must be a multiple of 8
        # (or equal the full N).
        bn = max(8, (bn // 8) * 8)
        bn = min(bn, n)
    return bn


# ----------------------------- public API ------------------------------------


def segment_consensus(x, consensus_type: str, dim: int = 1):
    """Pallas implementation of SegmentConsensus.forward.

    x: (N, T, C) array; dim must be 1 (segment axis), matching TSN usage.
    """
    if consensus_type == "identity":
        return x
    if consensus_type != "avg":
        # PyTorch returns None for unrecognized consensus types.
        return None

    assert dim == 1, "Only dim=1 (segment axis) is supported, as used in TSN."
    n, t, c = x.shape
    itemsize = jnp.dtype(x.dtype).itemsize
    num_tc, base_limit, tile_target, phys_vmem = _chip_config()

    lane_dense = (c % 128 != 0)
    lane_c = _round_up(c, 128)
    if lane_dense:
        # 2-D (N, T*C) view: no lane padding in the input tile.
        in_row_bytes = _round_up(t * c, 128) * itemsize
    else:
        in_row_bytes = _round_up(t, 8) * lane_c * itemsize
    out_row_bytes = lane_c * itemsize

    bn = _choose_block_rows(n, in_row_bytes, tile_target, num_tc)
    grid = (pl.cdiv(n, bn),)

    # Actual VMEM need: double-buffered input + double-buffered output + f32
    # accumulator + slack.  Raise the scoped limit if a forced-minimum bn
    # exceeds the per-chip default, staying well under physical VMEM.
    required = 2 * bn * in_row_bytes + 2 * bn * out_row_bytes + bn * lane_c * 4
    vmem_limit = max(base_limit, required + (2 << 20))
    vmem_limit = int(min(vmem_limit, int(phys_vmem * 0.8)))

    cost = pl.CostEstimate(
        flops=n * t * c,
        transcendentals=0,
        bytes_accessed=(n * t * c + n * c) * itemsize,
    )
    compiler_params = pltpu.CompilerParams(
        dimension_semantics=("parallel",),
        vmem_limit_bytes=vmem_limit,
    )

    if lane_dense:
        x_in = x.reshape(n, t * c)  # free, row-major metadata reshape
        kernel = functools.partial(_avg_kernel_lane_dense, t=t, c=c)
        in_specs = [pl.BlockSpec((bn, t * c), lambda i: (i, 0))]
    else:
        x_in = x
        kernel = functools.partial(_avg_kernel_3d, t=t)
        in_specs = [pl.BlockSpec((bn, t, c), lambda i: (i, 0, 0))]

    out2d = pl.pallas_call(
        kernel,
        out_shape=jax.ShapeDtypeStruct((n, c), x.dtype),
        grid=grid,
        in_specs=in_specs,
        out_specs=pl.BlockSpec((bn, c), lambda i: (i, 0)),
        compiler_params=compiler_params,
        cost_estimate=cost,
    )(x_in)

    # Re-insert the keepdim segment axis (free, metadata-only reshape).
    return out2d.reshape(n, 1, c)


class ConsensusModule:
    """JAX/Pallas port of the PyTorch ConsensusModule."""

    def __init__(self, consensus_type: str, dim: int = 1):
        self.consensus_type = (
            consensus_type if consensus_type != "rnn" else "identity"
        )
        self.dim = dim

    def __call__(self, x):
        return segment_consensus(x, self.consensus_type, self.dim)


if __name__ == "__main__":
    key = jax.random.PRNGKey(0)

    # (batch, num_segments, num_classes) — typical TSN consensus input.
    N, T, C = 2, 8, 32
    x = jax.random.normal(key, (N, T, C), dtype=jnp.float32)

    # 'avg' consensus (the hot path): mean over segments, keepdim.
    avg_mod = ConsensusModule("avg", dim=1)
    y_avg = jax.block_until_ready(avg_mod(x))
    ref_avg = jnp.mean(x, axis=1, keepdims=True)
    assert y_avg.shape == (N, 1, C)
    assert jnp.allclose(y_avg, ref_avg, atol=1e-5, rtol=1e-5)

    # Larger batch: exercises the megacore split / partial last block on v7x
    # and the single-block path on v5e/v6e.
    N2 = 24
    x2 = jax.random.normal(jax.random.PRNGKey(1), (N2, T, C), dtype=jnp.float32)
    y2 = jax.block_until_ready(avg_mod(x2))
    assert y2.shape == (N2, 1, C)
    assert jnp.allclose(y2, jnp.mean(x2, axis=1, keepdims=True),
                        atol=1e-5, rtol=1e-5)

    # C a multiple of 128 exercises the 3-D (already lane-aligned) path.
    N3, T3, C3 = 8, 4, 128
    x3 = jax.random.normal(jax.random.PRNGKey(2), (N3, T3, C3),
                           dtype=jnp.float32)
    y3 = jax.block_until_ready(avg_mod(x3))
    assert y3.shape == (N3, 1, C3)
    assert jnp.allclose(y3, jnp.mean(x3, axis=1, keepdims=True),
                        atol=1e-5, rtol=1e-5)

    # 'rnn' -> remapped to 'identity' (returns the input directly, no kernel).
    id_mod = ConsensusModule("rnn", dim=1)
    y_id = jax.block_until_ready(id_mod(x))
    assert y_id.shape == (N, T, C)
    assert jnp.allclose(y_id, x)

    # Unknown consensus type -> None, as in PyTorch.
    assert ConsensusModule("max", dim=1)(x) is None

    print("KERNEL_OK")
</pallas_src>

<mosaic_0001>
module attributes {stable_mosaic.version = 11 : i64} {
  func.func @_avg_kernel_lane_dense(%arg0: i32, %arg1: memref<2x256xf32, #tpu.memory_space<vmem>>, %arg2: memref<2x32xf32, #tpu.memory_space<vmem>>) attributes {dimension_semantics = [#tpu.dimension_semantics<parallel>], iteration_bounds = array<i64: 1>, scalar_prefetch = 0 : i64, scratch_operands = 0 : i64, tpu.core_type = #tpu.core_type<tc>, window_params = [{transform_indices = @transform_0, window_bounds = array<i64: 2, 256>}, {transform_indices = @transform_1, window_bounds = array<i64: 2, 32>}]} {
    %c0 = arith.constant 0 : index
    %c0_0 = arith.constant 0 : index
    %0 = vector.load %arg1[%c0, %c0_0] : memref<2x256xf32, #tpu.memory_space<vmem>>, vector<2x32xf32>
    %c0_1 = arith.constant 0 : index
    %c32 = arith.constant 32 : index
    %1 = vector.load %arg1[%c0_1, %c32] : memref<2x256xf32, #tpu.memory_space<vmem>>, vector<2x32xf32>
    %2 = arith.addf %0, %1 : vector<2x32xf32>
    %c0_2 = arith.constant 0 : index
    %c64 = arith.constant 64 : index
    %3 = vector.load %arg1[%c0_2, %c64] : memref<2x256xf32, #tpu.memory_space<vmem>>, vector<2x32xf32>
    %4 = arith.addf %2, %3 : vector<2x32xf32>
    %c0_3 = arith.constant 0 : index
    %c96 = arith.constant 96 : index
    %5 = vector.load %arg1[%c0_3, %c96] : memref<2x256xf32, #tpu.memory_space<vmem>>, vector<2x32xf32>
    %6 = arith.addf %4, %5 : vector<2x32xf32>
    %c0_4 = arith.constant 0 : index
    %c128 = arith.constant 128 : index
    %7 = vector.load %arg1[%c0_4, %c128] : memref<2x256xf32, #tpu.memory_space<vmem>>, vector<2x32xf32>
    %8 = arith.addf %6, %7 : vector<2x32xf32>
    %c0_5 = arith.constant 0 : index
    %c160 = arith.constant 160 : index
    %9 = vector.load %arg1[%c0_5, %c160] : memref<2x256xf32, #tpu.memory_space<vmem>>, vector<2x32xf32>
    %10 = arith.addf %8, %9 : vector<2x32xf32>
    %c0_6 = arith.constant 0 : index
    %c192 = arith.constant 192 : index
    %11 = vector.load %arg1[%c0_6, %c192] : memref<2x256xf32, #tpu.memory_space<vmem>>, vector<2x32xf32>
    %12 = arith.addf %10, %11 : vector<2x32xf32>
    %c0_7 = arith.constant 0 : index
    %c224 = arith.constant 224 : index
    %13 = vector.load %arg1[%c0_7, %c224] : memref<2x256xf32, #tpu.memory_space<vmem>>, vector<2x32xf32>
    %14 = arith.addf %12, %13 : vector<2x32xf32>
    %cst = arith.constant 1.250000e-01 : f32
    %15 = vector.broadcast %cst : f32 to vector<2x32xf32>
    %16 = arith.mulf %14, %15 : vector<2x32xf32>
    %c0_8 = arith.constant 0 : index
    %c0_9 = arith.constant 0 : index
    %17 = vector.load %arg2[%c0_8, %c0_9] : memref<2x32xf32, #tpu.memory_space<vmem>>, vector<2x32xf32>
    tpu.vector_store %arg2[%c0_8, %c0_9], %16 {strides = array<i32>} : memref<2x32xf32, #tpu.memory_space<vmem>>, vector<2x32xf32>,
    return
  }
  func.func @transform_0(%arg0: i32) -> (i32, i32) {
    %c0_i32 = arith.constant 0 : i32
    %c0_i32_0 = arith.constant 0 : i32
    return %arg0, %c0_i32 : i32, i32
  }
  func.func @transform_1(%arg0: i32) -> (i32, i32) {
    %c0_i32 = arith.constant 0 : i32
    %c0_i32_0 = arith.constant 0 : i32
    return %arg0, %c0_i32 : i32, i32
  }
}

</mosaic_0001>

<llo_original>
// kernel: tpu_custom_call.1
$region0: #{tpu_custom_call.1}
  #allocation0 [shape = 'u32[]', space=smem, size = 0x4, offset = 0x4, fixed_abs, tag = 'smem constant byte address 0x4 - core index']
  #allocation1 [shape = 'u32[72,128]{1,0:T(1,128)}', space=vmem, size = 0x9000, scoped, tag = 'internal scratch']
  %s0 = inlined_call_operand.hbm [shape: f32[2,256], index: 0, kind: input, shape index: {}]
  %s1 = inlined_call_operand.hbm [shape: f32[2,32], index: 1, kind: output, shape index: {}]
  %s2 = sld [smem:[#allocation0]]
  $region18: #{tpu_custom_call.1} parent=0
    _
  %s4 = ssub.s32 1, %s2
  %s5 = scalar_select 0, %s4, %s2
  $region1: #{tpu_custom_call.1} parent=0
    #allocation2 [shape = 'u8[2048]{0}', space=vmem, size = 0x800, scoped, tag = 'input window, operand 0, single buffered']
    #allocation3 [shape = 's32[1]{0}', space=sflag, size = 0x4, scoped, tag = 'scoped memory for tpu_custom_call.1']
    #allocation4 [shape = 's32[1]{0}', space=sflag, size = 0x4, scoped, tag = 'scoped memory for tpu_custom_call.1']
    #allocation5 [shape = 'u8[1024]{0}', space=vmem, size = 0x400, scoped, tag = 'output window, operand 0, single buffered']
    %6 = vsyncpa [#allocation3], 0
    %7 = vsyncpa [#allocation4], 0
    // Predicated region
    $region2: #{tpu_custom_call.1} parent=1 // pred_check
      _
    $region3: #{tpu_custom_call.1} parent=1 // pred_check_branch
      %9 = sbr.rel (0) target = $region5
    $region4: #{tpu_custom_call.1} parent=1 // pred_region
      %11 = vsyncadd [#allocation3], 0
      %s13 = sshll.u32 %s0, 4
      %s14 = int_to_ptr.hbm [resolvable:$true] %s13
      %s15 = sshll.u32 [#allocation2], 4
      %s16 = int_to_ptr.vmem [resolvable:$true] %s15
      %18 = dma.hbm_to_vmem [thread:$0]  %s14, 64, %s16, [#allocation3]
    $region5: #{tpu_custom_call.1} parent=1 // pred_fallthru
      _
    // Predicated region
    $region6: #{tpu_custom_call.1} parent=1 // pred_check
      _
    $region7: #{tpu_custom_call.1} parent=1 // pred_check_branch
      %20 = sbr.rel (0) target = $region9
    $region8: #{tpu_custom_call.1} parent=1 // pred_region
      %22 = dma.done [#allocation3], 64
    $region9: #{tpu_custom_call.1} parent=1 // pred_fallthru
      _
    %v23 = vld [vmem:[#allocation2] sm:$0x3]
    %25 = vrot.lane.b32.xlu0 %v23, 96
    %v26 = vpop.permute.xlu0 %25
    %v28 = vadd.f32 %v23, %v26
    %29 = vrot.lane.b32.xlu0 %v23, 64
    %v30 = vpop.permute.xlu0 %29
    %v32 = vadd.f32 %v28, %v30
    %33 = vrot.lane.b32.xlu0 %v23, 32
    %v34 = vpop.permute.xlu0 %33
    %v36 = vadd.f32 %v32, %v34
    %v37 = vld [vmem:[#allocation2 + $0x2] sm:$0x3]
    %v38 = vadd.f32 %v36, %v37
    %40 = vrot.lane.b32.xlu0 %v37, 96
    %v41 = vpop.permute.xlu0 %40
    %v43 = vadd.f32 %v38, %v41
    %44 = vrot.lane.b32.xlu0 %v37, 64
    %v45 = vpop.permute.xlu0 %44
    %v47 = vadd.f32 %v43, %v45
    %48 = vrot.lane.b32.xlu0 %v37, 32
    %v49 = vpop.permute.xlu0 %48
    %v51 = vadd.f32 %v47, %v49
    %v52 = vmul.f32 %v51, 0.125
    %vm53 = vcmask 254976
    %54 = vst.msk [vmem:[#allocation5] sm:$0x3] %vm53, %v52
    // Predicated region
    $region10: #{tpu_custom_call.1} parent=1 // pred_check
      _
    $region11: #{tpu_custom_call.1} parent=1 // pred_check_branch
      %56 = sbr.rel (0) target = $region13
    $region12: #{tpu_custom_call.1} parent=1 // pred_region
      %58 = vsyncadd [#allocation4], 0
      %s60 = sshll.u32 [#allocation5], 4
      %s61 = int_to_ptr.vmem [resolvable:$true] %s60
      %s62 = sshll.u32 %s1, 4
      %s63 = int_to_ptr.hbm [resolvable:$true] %s62
      %65 = dma.vmem_to_hbm [thread:$0]  %s61, 32, %s63, [#allocation4]
    $region13: #{tpu_custom_call.1} parent=1 // pred_fallthru
      _
    // Predicated region
    $region14: #{tpu_custom_call.1} parent=1 // pred_check
      _
    $region15: #{tpu_custom_call.1} parent=1 // pred_check_branch
      %67 = sbr.rel (0) target = $region17
    $region16: #{tpu_custom_call.1} parent=1 // pred_region
      %69 = dma.done [#allocation4], 32
    $region17: #{tpu_custom_call.1} parent=1 // pred_fallthru
      _
    %70 = vsyncpa [#allocation3], 1
    %71 = vsyncpa [#allocation4], 1

</llo_original>
